<compile_context>
chip_gen: v7x
topology: tpu7x:2x2x1
jax: 0.10.0
libtpu: 0.0.40
codegen_flags: <defaults>
</compile_context>

<pallas_src>
import functools

import jax
import jax.numpy as jnp
from jax import lax
from jax.experimental import pallas as pl
from jax.experimental.pallas import tpu as pltpu


def _nce_loss_kernel(q_ref, k_ref, kp_ref, o_ref, *, inv_temp):
    # q_ref : (1, D, TI)  query tile, native layout (feature dim on sublanes, spatial on lanes)
    # k_ref : (1, D, S)   full key slab for this batch element (resident across the i tiles)
    # kp_ref: (1, D, TI)  key columns aligned with the query tile (the positives / diagonal)
    # o_ref : (1, 1, TI)  per-query loss for this tile (lane-dense output block)
    q = q_ref[0].astype(jnp.float32)      # (D, TI)
    k = k_ref[0].astype(jnp.float32)      # (D, S)
    kp = kp_ref[0].astype(jnp.float32)    # (D, TI)

    eps = jnp.float32(1e-12)
    # F.normalize(p=1, dim=feature): x / max(sum|x|, eps); feature dim = sublane axis.
    qn = q / jnp.maximum(jnp.sum(jnp.abs(q), axis=0, keepdims=True), eps)
    kn = k / jnp.maximum(jnp.sum(jnp.abs(k), axis=0, keepdims=True), eps)
    kpn = kp / jnp.maximum(jnp.sum(jnp.abs(kp), axis=0, keepdims=True), eps)

    # Fold 1/temperature into the small query tile once (cheaper than scaling (S, TI)).
    qn = qn * jnp.float32(inv_temp)

    # scores[j, r] = <k_bj, q_b(i*TI+r)> / T  -> (S, TI); queries stay on the lane axis.
    # Small in-kernel transpose of the key slab so the MXU matmul is the plain MK x KN form.
    kt = jnp.transpose(kn, (1, 0))                                    # (S, D)
    scores = lax.dot_general(kt, qn, (((1,), (0,)), ((), ())),
                             preferred_element_type=jnp.float32)       # (S, TI)

    # Positive logit per query: elementwise dot with the aligned key columns (exact diagonal).
    pos = jnp.sum(kpn * qn, axis=0, keepdims=True)                     # (1, TI)

    # logsumexp over all keys (the masked-diag + l_pos concat in the torch code is
    # mathematically identical to a logsumexp over the full unmasked row).
    m = jnp.max(scores, axis=0, keepdims=True)                         # (1, TI)
    lse = m + jnp.log(jnp.sum(jnp.exp(scores - m), axis=0, keepdims=True))

    o_ref[...] = jnp.reshape(lse - pos, o_ref.shape)


def _pick_spatial_tile(s, max_bytes=4 << 20):
    """Largest multiple-of-128 divisor of s whose (S, TI) f32 score tile fits max_bytes."""
    cap = max(128, (max_bytes // (4 * s)) // 128 * 128)
    best = None
    t = 128
    while t <= min(s, cap):
        if s % t == 0:
            best = t
        t += 128
    return best if best is not None else s
    # TODO(synk): pad + mask the spatial axis when S is large and has no 128-divisor.


def contrastive_loss_sup_pallas(feat_q, feat_k, *, temperature=0.07,
                                base_temperature=0.07):
    """feat_q, feat_k: (B, D, *spatial). Returns the scalar loss of contrastive_loss_sup."""
    assert feat_q.shape == feat_k.shape, (feat_q.shape, feat_k.shape)
    b, d = int(feat_q.shape[0]), int(feat_q.shape[1])
    s = 1
    for x in feat_q.shape[2:]:
        s *= int(x)
    # Free reshape (merges trailing dims): keeps the native layout, spatial axis on lanes.
    q3 = feat_q.reshape(b, d, s)
    k3 = feat_k.reshape(b, d, s)

    ti = _pick_spatial_tile(s)
    grid = (b, s // ti)

    kernel = functools.partial(_nce_loss_kernel, inv_temp=1.0 / float(temperature))

    per_row = pl.pallas_call(
        kernel,
        out_shape=jax.ShapeDtypeStruct((b, 1, s), jnp.float32),
        grid_spec=pltpu.PrefetchScalarGridSpec(
            num_scalar_prefetch=0,
            grid=grid,
            in_specs=[
                pl.BlockSpec((1, d, ti), lambda bi, si: (bi, 0, si)),   # query tile
                pl.BlockSpec((1, d, s), lambda bi, si: (bi, 0, 0)),     # full key slab (per batch)
                pl.BlockSpec((1, d, ti), lambda bi, si: (bi, 0, si)),   # aligned key positives
            ],
            out_specs=pl.BlockSpec((1, 1, ti), lambda bi, si: (bi, 0, si)),
        ),
        compiler_params=pltpu.CompilerParams(
            dimension_semantics=("parallel", "parallel"),
            vmem_limit_bytes=32 * 1024 * 1024),
        # TODO(synk): for very large D*S, tile the key axis too (two-pass online logsumexp).
    )(q3, k3, k3)

    # torch.nn.CrossEntropyLoss default reduction='mean' over the B*S rows.
    return jnp.mean(per_row)


def _contrastive_loss_sup_ref(feat_q, feat_k, *, temperature=0.07):
    """Pure-JAX mirror of the PyTorch forward (for validation)."""
    b, d = feat_q.shape[0], feat_q.shape[1]
    q = jnp.transpose(feat_q.reshape(b, d, -1), (0, 2, 1)).astype(jnp.float32)  # (B,S,D)
    k = jnp.transpose(feat_k.reshape(b, d, -1), (0, 2, 1)).astype(jnp.float32)
    q = q / jnp.maximum(jnp.sum(jnp.abs(q), axis=-1, keepdims=True), 1e-12)
    k = k / jnp.maximum(jnp.sum(jnp.abs(k), axis=-1, keepdims=True), 1e-12)
    s = q.shape[1]
    hi = jax.lax.Precision.HIGHEST
    l_pos = jnp.einsum('bsd,bsd->bs', q, k, precision=hi).reshape(-1, 1)
    l_neg = jnp.einsum('bsd,btd->bst', q, k, precision=hi)
    l_neg = jnp.where(jnp.eye(s, dtype=bool)[None], -jnp.inf, l_neg).reshape(-1, s)
    out = jnp.concatenate([l_pos, l_neg], axis=1) / temperature
    lse = jax.nn.logsumexp(out, axis=1)
    return jnp.mean(lse - out[:, 0])


if __name__ == "__main__":
    key = jax.random.PRNGKey(0)
    kq, kk = jax.random.split(key)
    B, D, H, W = 2, 32, 16, 16          # batch=2, feature dim=32, spatial 16x16 (S=256)
    feat_q = jax.random.normal(kq, (B, D, H, W), jnp.float32)
    feat_k = jax.random.normal(kk, (B, D, H, W), jnp.float32)

    out = contrastive_loss_sup_pallas(feat_q, feat_k, temperature=0.07)
    out = jax.block_until_ready(out)

    ref = _contrastive_loss_sup_ref(feat_q, feat_k, temperature=0.07)
    assert jnp.allclose(out, ref, rtol=1e-3, atol=1e-3), (out, ref)
    print("KERNEL_OK")
</pallas_src>

<mosaic_0001>
module attributes {stable_mosaic.version = 11 : i64} {
  func.func @_nce_loss_kernel(%arg0: i32, %arg1: i32, %arg2: memref<1x32x256xf32, #tpu.memory_space<vmem>>, %arg3: memref<1x32x256xf32, #tpu.memory_space<vmem>>, %arg4: memref<1x32x256xf32, #tpu.memory_space<vmem>>, %arg5: memref<1x1x256xf32, #tpu.memory_space<vmem>>) attributes {dimension_semantics = [#tpu.dimension_semantics<parallel>, #tpu.dimension_semantics<parallel>], iteration_bounds = array<i64: 2, 1>, scalar_prefetch = 0 : i64, scratch_operands = 0 : i64, tpu.core_type = #tpu.core_type<tc>, window_params = [{transform_indices = @transform_0, window_bounds = array<i64: 1, 32, 256>}, {transform_indices = @transform_1, window_bounds = array<i64: 1, 32, 256>}, {transform_indices = @transform_2, window_bounds = array<i64: 1, 32, 256>}, {transform_indices = @transform_3, window_bounds = array<i64: 1, 1, 256>}]} {
    %c0 = arith.constant 0 : index
    %c0_0 = arith.constant 0 : index
    %c0_1 = arith.constant 0 : index
    %0 = vector.load %arg2[%c0, %c0_0, %c0_1] : memref<1x32x256xf32, #tpu.memory_space<vmem>>, vector<1x32x256xf32>
    %1 = vector.shape_cast %0 : vector<1x32x256xf32> to vector<32x256xf32>
    %c0_2 = arith.constant 0 : index
    %c0_3 = arith.constant 0 : index
    %c0_4 = arith.constant 0 : index
    %2 = vector.load %arg3[%c0_2, %c0_3, %c0_4] : memref<1x32x256xf32, #tpu.memory_space<vmem>>, vector<1x32x256xf32>
    %3 = vector.shape_cast %2 : vector<1x32x256xf32> to vector<32x256xf32>
    %c0_5 = arith.constant 0 : index
    %c0_6 = arith.constant 0 : index
    %c0_7 = arith.constant 0 : index
    %4 = vector.load %arg4[%c0_5, %c0_6, %c0_7] : memref<1x32x256xf32, #tpu.memory_space<vmem>>, vector<1x32x256xf32>
    %5 = vector.shape_cast %4 : vector<1x32x256xf32> to vector<32x256xf32>
    %6 = math.absf %1 : vector<32x256xf32>
    %cst = arith.constant dense<0.000000e+00> : vector<256xf32>
    %7 = vector.multi_reduction <add>, %6, %cst [0] : vector<32x256xf32> to vector<256xf32>
    %8 = vector.shape_cast %7 : vector<256xf32> to vector<1x256xf32>
    %cst_8 = arith.constant 9.99999996E-13 : f32
    %9 = vector.broadcast %cst_8 : f32 to vector<1x256xf32>
    %10 = arith.maximumf %8, %9 : vector<1x256xf32>
    %11 = vector.broadcast %10 : vector<1x256xf32> to vector<32x256xf32>
    %12 = arith.divf %1, %11 : vector<32x256xf32>
    %13 = math.absf %3 : vector<32x256xf32>
    %cst_9 = arith.constant dense<0.000000e+00> : vector<256xf32>
    %14 = vector.multi_reduction <add>, %13, %cst_9 [0] : vector<32x256xf32> to vector<256xf32>
    %15 = vector.shape_cast %14 : vector<256xf32> to vector<1x256xf32>
    %cst_10 = arith.constant 9.99999996E-13 : f32
    %16 = vector.broadcast %cst_10 : f32 to vector<1x256xf32>
    %17 = arith.maximumf %15, %16 : vector<1x256xf32>
    %18 = vector.broadcast %17 : vector<1x256xf32> to vector<32x256xf32>
    %19 = arith.divf %3, %18 : vector<32x256xf32>
    %20 = math.absf %5 : vector<32x256xf32>
    %cst_11 = arith.constant dense<0.000000e+00> : vector<256xf32>
    %21 = vector.multi_reduction <add>, %20, %cst_11 [0] : vector<32x256xf32> to vector<256xf32>
    %22 = vector.shape_cast %21 : vector<256xf32> to vector<1x256xf32>
    %cst_12 = arith.constant 9.99999996E-13 : f32
    %23 = vector.broadcast %cst_12 : f32 to vector<1x256xf32>
    %24 = arith.maximumf %22, %23 : vector<1x256xf32>
    %25 = vector.broadcast %24 : vector<1x256xf32> to vector<32x256xf32>
    %26 = arith.divf %5, %25 : vector<32x256xf32>
    %cst_13 = arith.constant 14.2857141 : f32
    %27 = vector.broadcast %cst_13 : f32 to vector<32x256xf32>
    %28 = arith.mulf %12, %27 : vector<32x256xf32>
    %29 = tpu.transpose %19, [1, 0] : vector<32x256xf32> -> vector<256x32xf32>
    %cst_14 = arith.constant dense<0.000000e+00> : vector<256x256xf32>
    %30 = tpu.matmul %29, %28, %cst_14 {dimension_numbers = #tpu.dot_dimension_numbers<[1], [0], [0], [1], [0, 0, 1, 1], [], []>} : vector<256x32xf32>, vector<32x256xf32>, vector<256x256xf32> -> vector<256x256xf32>
    %31 = arith.mulf %26, %28 : vector<32x256xf32>
    %cst_15 = arith.constant dense<0.000000e+00> : vector<256xf32>
    %32 = vector.multi_reduction <add>, %31, %cst_15 [0] : vector<32x256xf32> to vector<256xf32>
    %33 = vector.shape_cast %32 : vector<256xf32> to vector<1x256xf32>
    %cst_16 = arith.constant dense<0xFF800000> : vector<256xf32>
    %34 = vector.multi_reduction <maximumf>, %30, %cst_16 [0] : vector<256x256xf32> to vector<256xf32>
    %35 = vector.shape_cast %34 : vector<256xf32> to vector<1x256xf32>
    %36 = vector.broadcast %35 : vector<1x256xf32> to vector<256x256xf32>
    %37 = arith.subf %30, %36 : vector<256x256xf32>
    %38 = math.exp %37 : vector<256x256xf32>
    %cst_17 = arith.constant dense<0.000000e+00> : vector<256xf32>
    %39 = vector.multi_reduction <add>, %38, %cst_17 [0] : vector<256x256xf32> to vector<256xf32>
    %40 = vector.shape_cast %39 : vector<256xf32> to vector<1x256xf32>
    %41 = math.log %40 : vector<1x256xf32>
    %42 = arith.addf %35, %41 : vector<1x256xf32>
    %43 = arith.subf %42, %33 : vector<1x256xf32>
    %44 = vector.shape_cast %43 : vector<1x256xf32> to vector<1x1x256xf32>
    %c0_18 = arith.constant 0 : index
    %c0_19 = arith.constant 0 : index
    %c0_20 = arith.constant 0 : index
    %45 = vector.load %arg5[%c0_18, %c0_19, %c0_20] : memref<1x1x256xf32, #tpu.memory_space<vmem>>, vector<1x1x256xf32>
    tpu.vector_store %arg5[%c0_18, %c0_19, %c0_20], %44 {strides = array<i32>} : memref<1x1x256xf32, #tpu.memory_space<vmem>>, vector<1x1x256xf32>,
    return
  }
  func.func @transform_0(%arg0: i32, %arg1: i32) -> (i32, i32, i32) {
    %c0_i32 = arith.constant 0 : i32
    %c0_i32_0 = arith.constant 0 : i32
    return %arg0, %c0_i32, %arg1 : i32, i32, i32
  }
  func.func @transform_1(%arg0: i32, %arg1: i32) -> (i32, i32, i32) {
    %c0_i32 = arith.constant 0 : i32
    %c0_i32_0 = arith.constant 0 : i32
    %c0_i32_1 = arith.constant 0 : i32
    return %arg0, %c0_i32, %c0_i32_0 : i32, i32, i32
  }
  func.func @transform_2(%arg0: i32, %arg1: i32) -> (i32, i32, i32) {
    %c0_i32 = arith.constant 0 : i32
    %c0_i32_0 = arith.constant 0 : i32
    return %arg0, %c0_i32, %arg1 : i32, i32, i32
  }
  func.func @transform_3(%arg0: i32, %arg1: i32) -> (i32, i32, i32) {
    %c0_i32 = arith.constant 0 : i32
    %c0_i32_0 = arith.constant 0 : i32
    return %arg0, %c0_i32, %arg1 : i32, i32, i32
  }
}

</mosaic_0001>

<llo_original>
// kernel: tpu_custom_call.1
$region0: #{tpu_custom_call.1}
  #allocation0 [shape = 'u32[]', space=smem, size = 0x4, offset = 0x4, fixed_abs, tag = 'smem constant byte address 0x4 - core index']
  #allocation1 [shape = 'u32[144,128]{1,0:T(1,128)}', space=vmem, size = 0x12000, scoped, tag = 'internal scratch']
  %s0 = inlined_call_operand.hbm [shape: f32[2,32,256], index: 0, kind: input, shape index: {}]
  %s1 = inlined_call_operand.hbm [shape: f32[2,32,256], index: 1, kind: input, shape index: {}]
  %s2 = inlined_call_operand.hbm [shape: f32[2,32,256], index: 2, kind: input, shape index: {}]
  %s3 = inlined_call_operand.hbm [shape: f32[2,1,256], index: 3, kind: output, shape index: {}]
  %s4 = sld [smem:[#allocation0]]
  $region57: #{tpu_custom_call.1} parent=0
    _
  %s6 = ssub.s32 1, %s4
  %s7 = scalar_select 0, %s6, %s4
  $region1: #{tpu_custom_call.1} parent=0
    #allocation2 [shape = 'u8[65536]{0}', space=vmem, size = 0x10000, scoped, tag = 'input window, operand 0']
    #allocation3 [shape = 's32[2]{0}', space=sflag, size = 0x8, scoped, tag = 'scoped memory for tpu_custom_call.1']
    #allocation4 [shape = 's32[2]{0}', space=sflag, size = 0x8, scoped, tag = 'scoped memory for tpu_custom_call.1']
    #allocation5 [shape = 'u8[65536]{0}', space=vmem, size = 0x10000, scoped, tag = 'input window, operand 1']
    #allocation6 [shape = 's32[2]{0}', space=sflag, size = 0x8, scoped, tag = 'scoped memory for tpu_custom_call.1']
    #allocation7 [shape = 'u8[65536]{0}', space=vmem, size = 0x10000, scoped, tag = 'input window, operand 2']
    #allocation8 [shape = 'u8[2048]{0}', space=vmem, size = 0x800, scoped, tag = 'output window, operand 0']
    %8 = vsyncpa [#allocation3], 0
    %s9 = scalar_lea.sflag [#allocation3], 1
    %10 = vsyncpa %s9, 0
    %11 = vsyncpa [#allocation6], 0
    %s12 = scalar_lea.sflag [#allocation6], 1
    %13 = vsyncpa %s12, 0
    %14 = vsyncpa [#allocation4], 0
    %s15 = scalar_lea.sflag [#allocation4], 1
    %16 = vsyncpa %s15, 0
    loop: start=0, step=1, limit=4
    $region2: #{tpu_custom_call.1} parent=1 // loop_pre_header
      _
    $region3: #{tpu_custom_call.1} parent=1 // loop_header
      %s18 = sphi 0, %s22
      %p19 = scmp.ge.s32.totalorder %s18, 4
      %s25 = sphi 0, %s37
      %s26 = sphi 0, %s33
      %s27 = sphi 0, %s25
      %s28 = sphi 0, %s26
      %s29 = sphi 0, %s27
      %s30 = sphi 0, %s28
      %s42 = sphi 0, %s44
      %s45 = sphi 0, %s42
      %s46 = sphi 0, %s45
      %s62 = sphi 0, %s46
      %s68 = sphi 0, %s70
      %s71 = sphi 0, %s68
      %s72 = sphi 0, %s71
      %s88 = sphi 0, %s72
      %s96 = sphi 0, %s98
      %s99 = sphi 0, %s96
      %s100 = sphi 0, %s99
      %s116 = sphi 0, %s100
      %s124 = sphi 0, %s126
      %s127 = sphi 0, %s124
      %s128 = sphi 0, %s127
      %s144 = sphi 0, %s128
    $region4: #{tpu_custom_call.1} parent=1 // loop_header_branch
      %21 = sbr.rel (%p19) target = $region8
    $region5: #{tpu_custom_call.1} parent=1 // loop_body
      %s23 = ssub.s32 %s18, 1
      %s24 = ssub.s32 %s18, 2
      %s31 = sadd.s32 1, %s26
      %p32 = scmp.ge.s32.totalorder %s31, 1
      %s33 = scalar_select %p32, 0, %s31
      %s34 = sadd.s32 1, %s25
      %s35 = scalar_select %p32, %s34, %s25
      %p36 = scmp.ge.s32.totalorder %s35, 2
      %s37 = scalar_select %p36, 0, %s35
      %s38 = ssub.s32 %s25, %s37
      %s39 = ssub.s32 %s26, %s33
      %s40 = sor.u32 %s38, %s39
      %p41 = scmp.eq.s32.totalorder %s40, 0
      %s43 = sadd.s32 %s42, 1
      %s44 = scalar_select %p41, %s42, %s43
      %p47 = pneg %p41
      %p48 = scmp.eq.s32.totalorder %s18, 1
      %p49 = por %p47, %p48
      %p50 = scmp.ne.s32.totalorder %s42, %s45
      %p51 = scmp.eq.s32.totalorder %s18, 0
      %p52 = por %p50, %p51
      %p53 = scmp.ne.s32.totalorder %s42, %s45
      %p54 = scmp.eq.s32.totalorder %s23, 1
      %p55 = por %p53, %p54
      %p56 = scmp.ne.s32.totalorder %s45, %s46
      %p57 = scmp.eq.s32.totalorder %s23, 0
      %p58 = por %p56, %p57
      %p59 = scmp.ne.s32.totalorder %s45, %s46
      %p60 = scmp.eq.s32.totalorder %s24, 1
      %p61 = por %p59, %p60
      %p63 = scmp.ne.s32.totalorder %s46, %s62
      %p64 = scmp.eq.s32.totalorder %s24, 0
      %p65 = por %p63, %p64
      %s66 = ssub.s32 %s25, %s37
      %p67 = scmp.eq.s32.totalorder %s66, 0
      %s69 = sadd.s32 %s68, 1
      %s70 = scalar_select %p67, %s68, %s69
      %p73 = pneg %p67
      %p74 = scmp.eq.s32.totalorder %s18, 1
      %p75 = por %p73, %p74
      %p76 = scmp.ne.s32.totalorder %s68, %s71
      %p77 = scmp.eq.s32.totalorder %s18, 0
      %p78 = por %p76, %p77
      %p79 = scmp.ne.s32.totalorder %s68, %s71
      %p80 = scmp.eq.s32.totalorder %s23, 1
      %p81 = por %p79, %p80
      %p82 = scmp.ne.s32.totalorder %s71, %s72
      %p83 = scmp.eq.s32.totalorder %s23, 0
      %p84 = por %p82, %p83
      %p85 = scmp.ne.s32.totalorder %s71, %s72
      %p86 = scmp.eq.s32.totalorder %s24, 1
      %p87 = por %p85, %p86
      %p89 = scmp.ne.s32.totalorder %s72, %s88
      %p90 = scmp.eq.s32.totalorder %s24, 0
      %p91 = por %p89, %p90
      %s92 = ssub.s32 %s25, %s37
      %s93 = ssub.s32 %s26, %s33
      %s94 = sor.u32 %s92, %s93
      %p95 = scmp.eq.s32.totalorder %s94, 0
      %s97 = sadd.s32 %s96, 1
      %s98 = scalar_select %p95, %s96, %s97
      %p101 = pneg %p95
      %p102 = scmp.eq.s32.totalorder %s18, 1
      %p103 = por %p101, %p102
      %p104 = scmp.ne.s32.totalorder %s96, %s99
      %p105 = scmp.eq.s32.totalorder %s18, 0
      %p106 = por %p104, %p105
      %p107 = scmp.ne.s32.totalorder %s96, %s99
      %p108 = scmp.eq.s32.totalorder %s23, 1
      %p109 = por %p107, %p108
      %p110 = scmp.ne.s32.totalorder %s99, %s100
      %p111 = scmp.eq.s32.totalorder %s23, 0
      %p112 = por %p110, %p111
      %p113 = scmp.ne.s32.totalorder %s99, %s100
      %p114 = scmp.eq.s32.totalorder %s24, 1
      %p115 = por %p113, %p114
      %p117 = scmp.ne.s32.totalorder %s100, %s116
      %p118 = scmp.eq.s32.totalorder %s24, 0
      %p119 = por %p117, %p118
      %s120 = ssub.s32 %s25, %s37
      %s121 = ssub.s32 %s26, %s33
      %s122 = sor.u32 %s120, %s121
      %p123 = scmp.eq.s32.totalorder %s122, 0
      %s125 = sadd.s32 %s124, 1
      %s126 = scalar_select %p123, %s124, %s125
      %p129 = pneg %p123
      %p130 = scmp.eq.s32.totalorder %s18, 1
      %p131 = por %p129, %p130
      %p132 = scmp.ne.s32.totalorder %s124, %s127
      %p133 = scmp.eq.s32.totalorder %s18, 0
      %p134 = por %p132, %p133
      %p135 = scmp.ne.s32.totalorder %s124, %s127
      %p136 = scmp.eq.s32.totalorder %s23, 1
      %p137 = por %p135, %p136
      %p138 = scmp.ne.s32.totalorder %s127, %s128
      %p139 = scmp.eq.s32.totalorder %s23, 0
      %p140 = por %p138, %p139
      %p141 = scmp.ne.s32.totalorder %s127, %s128
      %p142 = scmp.eq.s32.totalorder %s24, 1
      %p143 = por %p141, %p142
      %p145 = scmp.ne.s32.totalorder %s128, %s144
      %p146 = scmp.eq.s32.totalorder %s24, 0
      %p147 = por %p145, %p146
      %p148 = scmp.le.s32.totalorder 1, %s18
      %p149 = scmp.lt.s32.totalorder %s18, 3
      %p150 = pnand %p148, %p149
      %p151 = pneg %p150
      // Predicated region
      $region9: #{tpu_custom_call.1} parent=5 // pred_check
        _
      $region10: #{tpu_custom_call.1} parent=5 // pred_check_branch
        %153 = sbr.rel (%p150) target = $region12
      $region11: #{tpu_custom_call.1} parent=5 // pred_region
        %s154 = ssub.s32 %s18, 1
      $region12: #{tpu_custom_call.1} parent=5 // pred_fallthru
        _
      %p155 = scmp.lt.s32.totalorder %s18, 2
      // Predicated region
      $region13: #{tpu_custom_call.1} parent=5 // pred_check
        %p156 = pneg %p155
      $region14: #{tpu_custom_call.1} parent=5 // pred_check_branch
        %158 = sbr.rel (%p156) target = $region16
      $region15: #{tpu_custom_call.1} parent=5 // pred_region
        // Predicated region
        $region17: #{tpu_custom_call.1} parent=15 // pred_check
          %p159 = pneg %p52
        $region18: #{tpu_custom_call.1} parent=15 // pred_check_branch
          %161 = sbr.rel (%p159) target = $region20
        $region19: #{tpu_custom_call.1} parent=15 // pred_region
          %s162 = sand.u32 %s42, 1
          %s163 = scalar_lea.sflag [#allocation3], %s162
          %s164 = sand.u32 %s42, 1
          %s165 = smul.addr %s164, 64
          %s166 = scalar_lea.vmem [#allocation2], %s165
          %s167 = smul.u32 2, %s26
          %s169 = ssub.s32 1024, 1024
          %170 = vsyncadd %s163, %s169
          %s171 = smul.addr %s25, 8
          %s172 = sadd.s32 %s167, %s171
          %s173 = smul.addr %s172, 128
          %s174 = scalar_lea.hbm %s0, %s173
          %s175 = sshll.u32 %s166, 4
          %s176 = int_to_ptr.vmem [resolvable:$true] %s175
          %181 = dma.hbm_to_vmem [thread:$0]  %s174, 1024, %s176, %s163, 256, 256, 16
        $region20: #{tpu_custom_call.1} parent=15 // pred_fallthru
          _
        // Predicated region
        $region21: #{tpu_custom_call.1} parent=15 // pred_check
          %p182 = pneg %p78
        $region22: #{tpu_custom_call.1} parent=15 // pred_check_branch
          %184 = sbr.rel (%p182) target = $region24
        $region23: #{tpu_custom_call.1} parent=15 // pred_region
          %s185 = sand.u32 %s18, 1
          %s186 = scalar_lea.sflag [#allocation6], %s185
          %s187 = sand.u32 %s68, 1
          %s188 = smul.addr %s187, 64
          %s189 = scalar_lea.vmem [#allocation5], %s188
          %s191 = ssub.s32 1024, 1024
          %192 = vsyncadd %s186, %s191
          %s193 = smul.addr %s25, 8
          %s194 = smul.addr %s193, 128
          %s195 = scalar_lea.hbm %s1, %s194
          %s196 = sshll.u32 %s189, 4
          %s197 = int_to_ptr.vmem [resolvable:$true] %s196
          %202 = dma.hbm_to_vmem [thread:$0]  %s195, 1024, %s197, %s186, 256, 256, 16
        $region24: #{tpu_custom_call.1} parent=15 // pred_fallthru
          _
        // Predicated region
        $region25: #{tpu_custom_call.1} parent=15 // pred_check
          %p203 = pneg %p106
        $region26: #{tpu_custom_call.1} parent=15 // pred_check_branch
          %205 = sbr.rel (%p203) target = $region28
        $region27: #{tpu_custom_call.1} parent=15 // pred_region
          %s206 = sand.u32 %s18, 1
          %s207 = scalar_lea.sflag [#allocation6], %s206
          %s208 = sand.u32 %s96, 1
          %s209 = smul.addr %s208, 64
          %s210 = scalar_lea.vmem [#allocation7], %s209
          %s211 = smul.u32 2, %s26
          %s213 = ssub.s32 1024, 1024
          %214 = vsyncadd %s207, %s213
          %s215 = smul.addr %s25, 8
          %s216 = sadd.s32 %s211, %s215
          %s217 = smul.addr %s216, 128
          %s218 = scalar_lea.hbm %s2, %s217
          %s219 = sshll.u32 %s210, 4
          %s220 = int_to_ptr.vmem [resolvable:$true] %s219
          %225 = dma.hbm_to_vmem [thread:$0]  %s218, 1024, %s220, %s207, 256, 256, 16
        $region28: #{tpu_custom_call.1} parent=15 // pred_fallthru
          _
      $region16: #{tpu_custom_call.1} parent=5 // pred_fallthru
        _
      %p226 = scmp.le.s32.totalorder 1, %s18
      %p227 = scmp.lt.s32.totalorder %s18, 3
      %p228 = pnand %p226, %p227
      %p229 = pneg %p228
      // Predicated region
      $region29: #{tpu_custom_call.1} parent=5 // pred_check
        _
      $region30: #{tpu_custom_call.1} parent=5 // pred_check_branch
        %231 = sbr.rel (%p228) target = $region32
      $region31: #{tpu_custom_call.1} parent=5 // pred_region
        %s232 = ssub.s32 %s18, 1
        %s233 = sand.u32 %s45, 1
        %s234 = scalar_lea.sflag [#allocation3], %s233
        %s235 = sand.u32 %s45, 1
        %s236 = smul.addr %s235, 64
        %s237 = scalar_lea.vmem [#allocation2], %s236
        // Predicated region
        $region33: #{tpu_custom_call.1} parent=31 // pred_check
          %p238 = pneg %p58
        $region34: #{tpu_custom_call.1} parent=31 // pred_check_branch
          %240 = sbr.rel (%p238) target = $region36
        $region35: #{tpu_custom_call.1} parent=31 // pred_region
          %241 = dma.done %s234, 1024
        $region36: #{tpu_custom_call.1} parent=31 // pred_fallthru
          _
        %s242 = sand.u32 %s23, 1
        %s243 = scalar_lea.sflag [#allocation6], %s242
        %s244 = sand.u32 %s71, 1
        %s245 = smul.addr %s244, 64
        %s246 = scalar_lea.vmem [#allocation5], %s245
        // Predicated region
        $region37: #{tpu_custom_call.1} parent=31 // pred_check
          %p247 = pneg %p84
        $region38: #{tpu_custom_call.1} parent=31 // pred_check_branch
          %249 = sbr.rel (%p247) target = $region40
        $region39: #{tpu_custom_call.1} parent=31 // pred_region
          %250 = dma.done %s243, 1024
        $region40: #{tpu_custom_call.1} parent=31 // pred_fallthru
          _
        %s251 = sand.u32 %s23, 1
        %s252 = scalar_lea.sflag [#allocation6], %s251
        %s253 = sand.u32 %s99, 1
        %s254 = smul.addr %s253, 64
        %s255 = scalar_lea.vmem [#allocation7], %s254
        // Predicated region
        $region41: #{tpu_custom_call.1} parent=31 // pred_check
          %p256 = pneg %p112
        $region42: #{tpu_custom_call.1} parent=31 // pred_check_branch
          %258 = sbr.rel (%p256) target = $region44
        $region43: #{tpu_custom_call.1} parent=31 // pred_region
          %259 = dma.done %s252, 1024
        $region44: #{tpu_custom_call.1} parent=31 // pred_fallthru
          _
        %s260 = sand.u32 %s45, 1
        %s261 = scalar_lea.sflag [#allocation3], %s260
        %s262 = sand.u32 %s45, 1
        %s263 = smul.addr %s262, 64
        %s264 = scalar_lea.vmem [#allocation2], %s263
        %p265 = pneg %p58
        %p266 = pneg %p55
        %s267 = sand.u32 %s23, 1
        %s268 = scalar_lea.sflag [#allocation6], %s267
        %s269 = sand.u32 %s71, 1
        %s270 = smul.addr %s269, 64
        %s271 = scalar_lea.vmem [#allocation5], %s270
        %p272 = pneg %p84
        %p273 = pneg %p81
        %s274 = sand.u32 %s23, 1
        %s275 = scalar_lea.sflag [#allocation6], %s274
        %s276 = sand.u32 %s99, 1
        %s277 = smul.addr %s276, 64
        %s278 = scalar_lea.vmem [#allocation7], %s277
        %p279 = pneg %p112
        %p280 = pneg %p109
        %p281 = pneg %p140
        %p282 = pneg %p137
        %s283 = sand.u32 %s127, 1
        %s284 = scalar_lea.sflag [#allocation4], %s283
        %s285 = sand.u32 %s127, 1
        %s286 = smul.addr %s285, 2
        %s287 = scalar_lea.vmem [#allocation8], %s286
        %s288 = smul.u32 2, %s28
        %s289 = smul.u32 2, %s28
        %s290 = smul.u32 2, %s28
        %v291 = vld [vmem:[%s237] sm:$0xff]
        %v292 = vld [vmem:[%s237 + $0x8] sm:$0xff]
        %v293 = vld [vmem:[%s237 + $0x10] sm:$0xff]
        %v294 = vld [vmem:[%s237 + $0x18] sm:$0xff]
        %v295 = vld [vmem:[%s237 + $0x20] sm:$0xff]
        %v296 = vld [vmem:[%s237 + $0x28] sm:$0xff]
        %v297 = vld [vmem:[%s237 + $0x30] sm:$0xff]
        %v298 = vld [vmem:[%s237 + $0x38] sm:$0xff]
        %v299 = vld [vmem:[%s246] sm:$0xff]
        %v300 = vld [vmem:[%s246 + $0x8] sm:$0xff]
        %v301 = vld [vmem:[%s246 + $0x10] sm:$0xff]
        %v302 = vld [vmem:[%s246 + $0x18] sm:$0xff]
        %v303 = vld [vmem:[%s246 + $0x20] sm:$0xff]
        %v304 = vld [vmem:[%s246 + $0x28] sm:$0xff]
        %v305 = vld [vmem:[%s246 + $0x30] sm:$0xff]
        %v306 = vld [vmem:[%s246 + $0x38] sm:$0xff]
        %v307 = vld [vmem:[%s255] sm:$0xff]
        %v308 = vld [vmem:[%s255 + $0x8] sm:$0xff]
        %v309 = vld [vmem:[%s255 + $0x10] sm:$0xff]
        %v310 = vld [vmem:[%s255 + $0x18] sm:$0xff]
        %v311 = vld [vmem:[%s255 + $0x20] sm:$0xff]
        %v312 = vld [vmem:[%s255 + $0x28] sm:$0xff]
        %v313 = vld [vmem:[%s255 + $0x30] sm:$0xff]
        %v314 = vld [vmem:[%s255 + $0x38] sm:$0xff]
        %v315 = vand.u32 2147483647, %v291
        %v316 = vand.u32 2147483647, %v292
        %v317 = vand.u32 2147483647, %v293
        %v318 = vand.u32 2147483647, %v294
        %v319 = vand.u32 2147483647, %v295
        %v320 = vand.u32 2147483647, %v296
        %v321 = vand.u32 2147483647, %v297
        %v322 = vand.u32 2147483647, %v298
        %v323 = vadd.f32 %v315, %v317
        %v324 = vadd.f32 %v323, %v319
        %v325 = vadd.f32 %v324, %v321
        %v326 = vrot.slane %v325, 4
        %v327 = vadd.f32 %v325, %v326
        %v328 = vrot.slane %v327, 2
        %v329 = vadd.f32 %v327, %v328
        %v330 = vrot.slane %v329, 1
        %v331 = vadd.f32 %v329, %v330
        %v332 = vadd.f32 %v316, %v318
        %v333 = vadd.f32 %v332, %v320
        %v334 = vadd.f32 %v333, %v322
        %v335 = vrot.slane %v334, 4
        %v336 = vadd.f32 %v334, %v335
        %v337 = vrot.slane %v336, 2
        %v338 = vadd.f32 %v336, %v337
        %v339 = vrot.slane %v338, 1
        %v340 = vadd.f32 %v338, %v339
        %v341 = vmax.f32 %v331, 1e-12
        %v342 = vmax.f32 %v340, 1e-12
        %v343 = vrcp.pop %v341
        %v344 = vmul.f32 %v291, %v343
        %v345 = vrcp.pop %v342
        %v346 = vmul.f32 %v292, %v345
        %v347 = vmul.f32 %v293, %v343
        %v348 = vmul.f32 %v294, %v345
        %v349 = vmul.f32 %v295, %v343
        %v350 = vmul.f32 %v296, %v345
        %v351 = vmul.f32 %v297, %v343
        %v352 = vmul.f32 %v298, %v345
        %v353 = vand.u32 2147483647, %v299
        %v354 = vand.u32 2147483647, %v300
        %v355 = vand.u32 2147483647, %v301
        %v356 = vand.u32 2147483647, %v302
        %v357 = vand.u32 2147483647, %v303
        %v358 = vand.u32 2147483647, %v304
        %v359 = vand.u32 2147483647, %v305
        %v360 = vand.u32 2147483647, %v306
        %v361 = vadd.f32 %v353, %v355
        %v362 = vadd.f32 %v361, %v357
        %v363 = vadd.f32 %v362, %v359
        %v364 = vrot.slane %v363, 4
        %v365 = vadd.f32 %v363, %v364
        %v366 = vrot.slane %v365, 2
        %v367 = vadd.f32 %v365, %v366
        %v368 = vrot.slane %v367, 1
        %v369 = vadd.f32 %v367, %v368
        %v370 = vadd.f32 %v354, %v356
        %v371 = vadd.f32 %v370, %v358
        %v372 = vadd.f32 %v371, %v360
        %v373 = vrot.slane %v372, 4
        %v374 = vadd.f32 %v372, %v373
        %v375 = vrot.slane %v374, 2
        %v376 = vadd.f32 %v374, %v375
        %v377 = vrot.slane %v376, 1
        %v378 = vadd.f32 %v376, %v377
        %v379 = vmax.f32 %v369, 1e-12
        %v380 = vmax.f32 %v378, 1e-12
        %v381 = vrcp.pop %v379
        %v382 = vmul.f32 %v299, %v381
        %v383 = vrcp.pop %v380
        %v384 = vmul.f32 %v300, %v383
        %v385 = vmul.f32 %v301, %v381
        %v386 = vmul.f32 %v302, %v383
        %v387 = vmul.f32 %v303, %v381
        %v388 = vmul.f32 %v304, %v383
        %v389 = vmul.f32 %v305, %v381
        %v390 = vmul.f32 %v306, %v383
        %v391 = vand.u32 2147483647, %v307
        %v392 = vand.u32 2147483647, %v308
        %v393 = vand.u32 2147483647, %v309
        %v394 = vand.u32 2147483647, %v310
        %v395 = vand.u32 2147483647, %v311
        %v396 = vand.u32 2147483647, %v312
        %v397 = vand.u32 2147483647, %v313
        %v398 = vand.u32 2147483647, %v314
        %v399 = vadd.f32 %v391, %v393
        %v400 = vadd.f32 %v399, %v395
        %v401 = vadd.f32 %v400, %v397
        %v402 = vrot.slane %v401, 4
        %v403 = vadd.f32 %v401, %v402
        %v404 = vrot.slane %v403, 2
        %v405 = vadd.f32 %v403, %v404
        %v406 = vrot.slane %v405, 1
        %v407 = vadd.f32 %v405, %v406
        %v408 = vadd.f32 %v392, %v394
        %v409 = vadd.f32 %v408, %v396
        %v410 = vadd.f32 %v409, %v398
        %v411 = vrot.slane %v410, 4
        %v412 = vadd.f32 %v410, %v411
        %v413 = vrot.slane %v412, 2
        %v414 = vadd.f32 %v412, %v413
        %v415 = vrot.slane %v414, 1
        %v416 = vadd.f32 %v414, %v415
        %v417 = vmax.f32 %v407, 1e-12
        %v418 = vmax.f32 %v416, 1e-12
        %v419 = vrcp.pop %v417
        %v420 = vmul.f32 %v307, %v419
        %v421 = vrcp.pop %v418
        %v422 = vmul.f32 %v308, %v421
        %v423 = vmul.f32 %v309, %v419
        %v424 = vmul.f32 %v310, %v421
        %v425 = vmul.f32 %v311, %v419
        %v426 = vmul.f32 %v312, %v421
        %v427 = vmul.f32 %v313, %v419
        %v428 = vmul.f32 %v314, %v421
        %v429 = vmul.f32 %v344, 14.285714
        %v430 = vmul.f32 %v346, 14.285714
        %v431 = vmul.f32 %v347, 14.285714
        %v432 = vmul.f32 %v348, 14.285714
        %v433 = vmul.f32 %v349, 14.285714
        %v434 = vmul.f32 %v350, 14.285714
        %v435 = vmul.f32 %v351, 14.285714
        %v436 = vmul.f32 %v352, 14.285714
        %437 = vxpose.xlu0.b32.start [1/16] %v382, 128
        %438 = vxpose.xlu0.b32.cont [2/16] %v385, 128
        %439 = vxpose.xlu0.b32.cont [3/16] %v387, 128
        %440 = vxpose.xlu0.b32.cont [4/16] %v389, 128
        %441 = vxpose.xlu0.b32.cont [5/16] 0.0, 128
        %442 = vxpose.xlu0.b32.cont [6/16] 0.0, 128
        %443 = vxpose.xlu0.b32.cont [7/16] 0.0, 128
        %444 = vxpose.xlu0.b32.cont [8/16] 0.0, 128
        %445 = vxpose.xlu0.b32.cont [9/16] 0.0, 128
        %446 = vxpose.xlu0.b32.cont [10/16] 0.0, 128
        %447 = vxpose.xlu0.b32.cont [11/16] 0.0, 128
        %448 = vxpose.xlu0.b32.cont [12/16] 0.0, 128
        %449 = vxpose.xlu0.b32.cont [13/16] 0.0, 128
        %450 = vxpose.xlu0.b32.cont [14/16] 0.0, 128
        %451 = vxpose.xlu0.b32.cont [15/16] 0.0, 128
        %452 = vxpose.xlu0.b32.end [16/16] 0.0, 128
        %v453 = vpop.trf.xlu0
        %v454 = vpop.trf.xlu0
        %v455 = vpop.trf.xlu0
        %v456 = vpop.trf.xlu0
        %v457 = vpop.trf.xlu0
        %v458 = vpop.trf.xlu0
        %v459 = vpop.trf.xlu0
        %v460 = vpop.trf.xlu0
        %v461 = vpop.trf.xlu0
        %v462 = vpop.trf.xlu0
        %v463 = vpop.trf.xlu0
        %v464 = vpop.trf.xlu0
        %v465 = vpop.trf.xlu0
        %v466 = vpop.trf.xlu0
        %v467 = vpop.trf.xlu0
        %v468 = vpop.trf.xlu0
        %469 = vxpose.xlu0.b32.start [1/16] %v384, 128
        %470 = vxpose.xlu0.b32.cont [2/16] %v386, 128
        %471 = vxpose.xlu0.b32.cont [3/16] %v388, 128
        %472 = vxpose.xlu0.b32.cont [4/16] %v390, 128
        %473 = vxpose.xlu0.b32.cont [5/16] 0.0, 128
        %474 = vxpose.xlu0.b32.cont [6/16] 0.0, 128
        %475 = vxpose.xlu0.b32.cont [7/16] 0.0, 128
        %476 = vxpose.xlu0.b32.cont [8/16] 0.0, 128
        %477 = vxpose.xlu0.b32.cont [9/16] 0.0, 128
        %478 = vxpose.xlu0.b32.cont [10/16] 0.0, 128
        %479 = vxpose.xlu0.b32.cont [11/16] 0.0, 128
        %480 = vxpose.xlu0.b32.cont [12/16] 0.0, 128
        %481 = vxpose.xlu0.b32.cont [13/16] 0.0, 128
        %482 = vxpose.xlu0.b32.cont [14/16] 0.0, 128
        %483 = vxpose.xlu0.b32.cont [15/16] 0.0, 128
        %484 = vxpose.xlu0.b32.end [16/16] 0.0, 128
        %v485 = vpop.trf.xlu0
        %v486 = vpop.trf.xlu0
        %v487 = vpop.trf.xlu0
        %v488 = vpop.trf.xlu0
        %v489 = vpop.trf.xlu0
        %v490 = vpop.trf.xlu0
        %v491 = vpop.trf.xlu0
        %v492 = vpop.trf.xlu0
        %v493 = vpop.trf.xlu0
        %v494 = vpop.trf.xlu0
        %v495 = vpop.trf.xlu0
        %v496 = vpop.trf.xlu0
        %v497 = vpop.trf.xlu0
        %v498 = vpop.trf.xlu0
        %v499 = vpop.trf.xlu0
        %v500 = vpop.trf.xlu0
        %vm501 = vcmask 261120
        %v503 = vsel %vm501, %v453, 0
        %v506 = vsel %vm501, %v454, 0
        %v509 = vsel %vm501, %v455, 0
        %v512 = vsel %vm501, %v456, 0
        %v515 = vsel %vm501, %v457, 0
        %v518 = vsel %vm501, %v458, 0
        %v521 = vsel %vm501, %v459, 0
        %v524 = vsel %vm501, %v460, 0
        %v527 = vsel %vm501, %v461, 0
        %v530 = vsel %vm501, %v462, 0
        %v533 = vsel %vm501, %v463, 0
        %v536 = vsel %vm501, %v464, 0
        %v539 = vsel %vm501, %v465, 0
        %v542 = vsel %vm501, %v466, 0
        %v545 = vsel %vm501, %v467, 0
        %v548 = vsel %vm501, %v468, 0
        %v551 = vsel %vm501, %v485, 0
        %v554 = vsel %vm501, %v486, 0
        %v557 = vsel %vm501, %v487, 0
        %v560 = vsel %vm501, %v488, 0
        %v563 = vsel %vm501, %v489, 0
        %v566 = vsel %vm501, %v490, 0
        %v569 = vsel %vm501, %v491, 0
        %v572 = vsel %vm501, %v492, 0
        %v575 = vsel %vm501, %v493, 0
        %v578 = vsel %vm501, %v494, 0
        %v581 = vsel %vm501, %v495, 0
        %v584 = vsel %vm501, %v496, 0
        %v587 = vsel %vm501, %v497, 0
        %v590 = vsel %vm501, %v498, 0
        %v593 = vsel %vm501, %v499, 0
        %v596 = vsel %vm501, %v500, 0
        %598 = vmatprep.subr.mxu0 %v430
        %599 = vmatpush1.msra.mxu0 %v429
        %600 = vmatprep.subr.mxu0 %v432
        %601 = vmatpush1.msra.mxu0 %v431
        %602 = vmatprep.subr.mxu0 %v434
        %603 = vmatpush1.msra.mxu0 %v433
        %604 = vmatprep.subr.mxu0 %v436
        %605 = vmatpush1.msra.mxu0 %v435
        %606 = vmatprep.subr.mxu0 0.0
        %607 = vmatpush1.msra.mxu0 0.0
        %608 = vmatprep.subr.mxu0 0.0
        %609 = vmatpush1.msra.mxu0 0.0
        %610 = vmatprep.subr.mxu0 0.0
        %611 = vmatpush1.msra.mxu0 0.0
        %612 = vmatprep.subr.mxu0 0.0
        %613 = vmatpush1.msra.mxu0 0.0
        %614 = vmatprep.subr.mxu0 0.0
        %615 = vmatpush1.msra.mxu0 0.0
        %616 = vmatprep.subr.mxu0 0.0
        %617 = vmatpush1.msra.mxu0 0.0
        %618 = vmatprep.subr.mxu0 0.0
        %619 = vmatpush1.msra.mxu0 0.0
        %620 = vmatprep.subr.mxu0 0.0
        %621 = vmatpush1.msra.mxu0 0.0
        %622 = vmatprep.subr.mxu0 0.0
        %623 = vmatpush1.msra.mxu0 0.0
        %624 = vmatprep.subr.mxu0 0.0
        %625 = vmatpush1.msra.mxu0 0.0
        %626 = vmatprep.subr.mxu0 0.0
        %627 = vmatpush1.msra.mxu0 0.0
        %628 = vmatprep.subr.mxu0 0.0
        %629 = vmatpush1.msra.mxu0 0.0
        %630 = vmatprep.subr.mxu0 0.0
        %631 = vmatpush1.msra.mxu0 0.0
        %632 = vmatprep.subr.mxu0 0.0
        %633 = vmatpush1.msra.mxu0 0.0
        %634 = vmatprep.subr.mxu0 0.0
        %635 = vmatpush1.msra.mxu0 0.0
        %636 = vmatprep.subr.mxu0 0.0
        %637 = vmatpush1.msra.mxu0 0.0
        %638 = vmatprep.subr.mxu0 0.0
        %639 = vmatpush1.msra.mxu0 0.0
        %640 = vmatprep.subr.mxu0 0.0
        %641 = vmatpush1.msra.mxu0 0.0
        %642 = vmatprep.subr.mxu0 0.0
        %643 = vmatpush1.msra.mxu0 0.0
        %644 = vmatprep.subr.mxu0 0.0
        %645 = vmatpush1.msra.mxu0 0.0
        %646 = vmatprep.subr.mxu0 0.0
        %647 = vmatpush1.msra.mxu0 0.0
        %648 = vmatprep.subr.mxu0 0.0
        %649 = vmatpush1.msra.mxu0 0.0
        %650 = vmatprep.subr.mxu0 0.0
        %651 = vmatpush1.msra.mxu0 0.0
        %652 = vmatprep.subr.mxu0 0.0
        %653 = vmatpush1.msra.mxu0 0.0
        %654 = vmatprep.subr.mxu0 0.0
        %655 = vmatpush1.msra.mxu0 0.0
        %656 = vmatprep.subr.mxu0 0.0
        %657 = vmatpush1.msra.mxu0 0.0
        %658 = vmatprep.subr.mxu0 0.0
        %659 = vmatpush1.msra.mxu0 0.0
        %660 = vmatprep.subr.mxu0 0.0
        %661 = vmatpush1.msra.mxu0 0.0
        %662 = vmatprep.mubr.f32.mxu0 0.0
        %663 = vmatmul.mubr.f32.gmra.mrb[0].mxu0 %v503
        %v664 = vpop.f32.mrb[0].mxu0
        %v665 = vadd.f32 0.0, %v664
        %v666 = vpop.f32.mrb[0].mxu0
        %v667 = vadd.f32 0.0, %v666
        %668 = vmatprep.mubr.f32.mxu0 0.0
        %669 = vmatmul.mubr.f32.gmra.mrb[0].mxu0 %v506
        %v670 = vpop.f32.mrb[0].mxu0
        %v671 = vadd.f32 0.0, %v670
        %v672 = vpop.f32.mrb[0].mxu0
        %v673 = vadd.f32 0.0, %v672
        %674 = vmatprep.mubr.f32.mxu0 0.0
        %675 = vmatmul.mubr.f32.gmra.mrb[0].mxu0 %v509
        %v676 = vpop.f32.mrb[0].mxu0
        %v677 = vadd.f32 0.0, %v676
        %v678 = vpop.f32.mrb[0].mxu0
        %v679 = vadd.f32 0.0, %v678
        %680 = vmatprep.mubr.f32.mxu0 0.0
        %681 = vmatmul.mubr.f32.gmra.mrb[0].mxu0 %v512
        %v682 = vpop.f32.mrb[0].mxu0
        %v683 = vadd.f32 0.0, %v682
        %v684 = vpop.f32.mrb[0].mxu0
        %v685 = vadd.f32 0.0, %v684
        %686 = vmatprep.mubr.f32.mxu0 0.0
        %687 = vmatmul.mubr.f32.gmra.mrb[0].mxu0 %v515
        %v688 = vpop.f32.mrb[0].mxu0
        %v689 = vadd.f32 0.0, %v688
        %v690 = vpop.f32.mrb[0].mxu0
        %v691 = vadd.f32 0.0, %v690
        %692 = vmatprep.mubr.f32.mxu0 0.0
        %693 = vmatmul.mubr.f32.gmra.mrb[0].mxu0 %v518
        %v694 = vpop.f32.mrb[0].mxu0
        %v695 = vadd.f32 0.0, %v694
        %v696 = vpop.f32.mrb[0].mxu0
        %v697 = vadd.f32 0.0, %v696
        %698 = vmatprep.mubr.f32.mxu0 0.0
        %699 = vmatmul.mubr.f32.gmra.mrb[0].mxu0 %v521
        %v700 = vpop.f32.mrb[0].mxu0
        %v701 = vadd.f32 0.0, %v700
        %v702 = vpop.f32.mrb[0].mxu0
        %v703 = vadd.f32 0.0, %v702
        %704 = vmatprep.mubr.f32.mxu0 0.0
        %705 = vmatmul.mubr.f32.gmra.mrb[0].mxu0 %v524
        %v706 = vpop.f32.mrb[0].mxu0
        %v707 = vadd.f32 0.0, %v706
        %v708 = vpop.f32.mrb[0].mxu0
        %v709 = vadd.f32 0.0, %v708
        %710 = vmatprep.mubr.f32.mxu0 0.0
        %711 = vmatmul.mubr.f32.gmra.mrb[0].mxu0 %v527
        %v712 = vpop.f32.mrb[0].mxu0
        %v713 = vadd.f32 0.0, %v712
        %v714 = vpop.f32.mrb[0].mxu0
        %v715 = vadd.f32 0.0, %v714
        %716 = vmatprep.mubr.f32.mxu0 0.0
        %717 = vmatmul.mubr.f32.gmra.mrb[0].mxu0 %v530
        %v718 = vpop.f32.mrb[0].mxu0
        %v719 = vadd.f32 0.0, %v718
        %v720 = vpop.f32.mrb[0].mxu0
        %v721 = vadd.f32 0.0, %v720
        %722 = vmatprep.mubr.f32.mxu0 0.0
        %723 = vmatmul.mubr.f32.gmra.mrb[0].mxu0 %v533
        %v724 = vpop.f32.mrb[0].mxu0
        %v725 = vadd.f32 0.0, %v724
        %v726 = vpop.f32.mrb[0].mxu0
        %v727 = vadd.f32 0.0, %v726
        %728 = vmatprep.mubr.f32.mxu0 0.0
        %729 = vmatmul.mubr.f32.gmra.mrb[0].mxu0 %v536
        %v730 = vpop.f32.mrb[0].mxu0
        %v731 = vadd.f32 0.0, %v730
        %v732 = vpop.f32.mrb[0].mxu0
        %v733 = vadd.f32 0.0, %v732
        %734 = vmatprep.mubr.f32.mxu0 0.0
        %735 = vmatmul.mubr.f32.gmra.mrb[0].mxu0 %v539
        %v736 = vpop.f32.mrb[0].mxu0
        %v737 = vadd.f32 0.0, %v736
        %v738 = vpop.f32.mrb[0].mxu0
        %v739 = vadd.f32 0.0, %v738
        %740 = vmatprep.mubr.f32.mxu0 0.0
        %741 = vmatmul.mubr.f32.gmra.mrb[0].mxu0 %v542
        %v742 = vpop.f32.mrb[0].mxu0
        %v743 = vadd.f32 0.0, %v742
        %v744 = vpop.f32.mrb[0].mxu0
        %v745 = vadd.f32 0.0, %v744
        %746 = vmatprep.mubr.f32.mxu0 0.0
        %747 = vmatmul.mubr.f32.gmra.mrb[0].mxu0 %v545
        %v748 = vpop.f32.mrb[0].mxu0
        %v749 = vadd.f32 0.0, %v748
        %v750 = vpop.f32.mrb[0].mxu0
        %v751 = vadd.f32 0.0, %v750
        %752 = vmatprep.mubr.f32.mxu0 0.0
        %753 = vmatmul.mubr.f32.gmra.mrb[0].mxu0 %v548
        %v754 = vpop.f32.mrb[0].mxu0
        %v755 = vadd.f32 0.0, %v754
        %v756 = vpop.f32.mrb[0].mxu0
        %v757 = vadd.f32 0.0, %v756
        %758 = vmatprep.mubr.f32.mxu0 0.0
        %759 = vmatmul.mubr.f32.gmra.mrb[0].mxu0 %v551
        %v760 = vpop.f32.mrb[0].mxu0
        %v761 = vadd.f32 0.0, %v760
        %v762 = vpop.f32.mrb[0].mxu0
        %v763 = vadd.f32 0.0, %v762
        %764 = vmatprep.mubr.f32.mxu0 0.0
        %765 = vmatmul.mubr.f32.gmra.mrb[0].mxu0 %v554
        %v766 = vpop.f32.mrb[0].mxu0
        %v767 = vadd.f32 0.0, %v766
        %v768 = vpop.f32.mrb[0].mxu0
        %v769 = vadd.f32 0.0, %v768
        %770 = vmatprep.mubr.f32.mxu0 0.0
        %771 = vmatmul.mubr.f32.gmra.mrb[0].mxu0 %v557
        %v772 = vpop.f32.mrb[0].mxu0
        %v773 = vadd.f32 0.0, %v772
        %v774 = vpop.f32.mrb[0].mxu0
        %v775 = vadd.f32 0.0, %v774
        %776 = vmatprep.mubr.f32.mxu0 0.0
        %777 = vmatmul.mubr.f32.gmra.mrb[0].mxu0 %v560
        %v778 = vpop.f32.mrb[0].mxu0
        %v779 = vadd.f32 0.0, %v778
        %v780 = vpop.f32.mrb[0].mxu0
        %v781 = vadd.f32 0.0, %v780
        %782 = vmatprep.mubr.f32.mxu0 0.0
        %783 = vmatmul.mubr.f32.gmra.mrb[0].mxu0 %v563
        %v784 = vpop.f32.mrb[0].mxu0
        %v785 = vadd.f32 0.0, %v784
        %v786 = vpop.f32.mrb[0].mxu0
        %v787 = vadd.f32 0.0, %v786
        %788 = vmatprep.mubr.f32.mxu0 0.0
        %789 = vmatmul.mubr.f32.gmra.mrb[0].mxu0 %v566
        %v790 = vpop.f32.mrb[0].mxu0
        %v791 = vadd.f32 0.0, %v790
        %v792 = vpop.f32.mrb[0].mxu0
        %v793 = vadd.f32 0.0, %v792
        %794 = vmatprep.mubr.f32.mxu0 0.0
        %795 = vmatmul.mubr.f32.gmra.mrb[0].mxu0 %v569
        %v796 = vpop.f32.mrb[0].mxu0
        %v797 = vadd.f32 0.0, %v796
        %v798 = vpop.f32.mrb[0].mxu0
        %v799 = vadd.f32 0.0, %v798
        %800 = vmatprep.mubr.f32.mxu0 0.0
        %801 = vmatmul.mubr.f32.gmra.mrb[0].mxu0 %v572
        %v802 = vpop.f32.mrb[0].mxu0
        %v803 = vadd.f32 0.0, %v802
        %v804 = vpop.f32.mrb[0].mxu0
        %v805 = vadd.f32 0.0, %v804
        %806 = vmatprep.mubr.f32.mxu0 0.0
        %807 = vmatmul.mubr.f32.gmra.mrb[0].mxu0 %v575
        %v808 = vpop.f32.mrb[0].mxu0
        %v809 = vadd.f32 0.0, %v808
        %v810 = vpop.f32.mrb[0].mxu0
        %v811 = vadd.f32 0.0, %v810
        %812 = vmatprep.mubr.f32.mxu0 0.0
        %813 = vmatmul.mubr.f32.gmra.mrb[0].mxu0 %v578
        %v814 = vpop.f32.mrb[0].mxu0
        %v815 = vadd.f32 0.0, %v814
        %v816 = vpop.f32.mrb[0].mxu0
        %v817 = vadd.f32 0.0, %v816
        %818 = vmatprep.mubr.f32.mxu0 0.0
        %819 = vmatmul.mubr.f32.gmra.mrb[0].mxu0 %v581
        %v820 = vpop.f32.mrb[0].mxu0
        %v821 = vadd.f32 0.0, %v820
        %v822 = vpop.f32.mrb[0].mxu0
        %v823 = vadd.f32 0.0, %v822
        %824 = vmatprep.mubr.f32.mxu0 0.0
        %825 = vmatmul.mubr.f32.gmra.mrb[0].mxu0 %v584
        %v826 = vpop.f32.mrb[0].mxu0
        %v827 = vadd.f32 0.0, %v826
        %v828 = vpop.f32.mrb[0].mxu0
        %v829 = vadd.f32 0.0, %v828
        %830 = vmatprep.mubr.f32.mxu0 0.0
        %831 = vmatmul.mubr.f32.gmra.mrb[0].mxu0 %v587
        %v832 = vpop.f32.mrb[0].mxu0
        %v833 = vadd.f32 0.0, %v832
        %v834 = vpop.f32.mrb[0].mxu0
        %v835 = vadd.f32 0.0, %v834
        %836 = vmatprep.mubr.f32.mxu0 0.0
        %837 = vmatmul.mubr.f32.gmra.mrb[0].mxu0 %v590
        %v838 = vpop.f32.mrb[0].mxu0
        %v839 = vadd.f32 0.0, %v838
        %v840 = vpop.f32.mrb[0].mxu0
        %v841 = vadd.f32 0.0, %v840
        %842 = vmatprep.mubr.f32.mxu0 0.0
        %843 = vmatmul.mubr.f32.gmra.mrb[0].mxu0 %v593
        %v844 = vpop.f32.mrb[0].mxu0
        %v845 = vadd.f32 0.0, %v844
        %v846 = vpop.f32.mrb[0].mxu0
        %v847 = vadd.f32 0.0, %v846
        %848 = vmatprep.mubr.f32.mxu0 0.0
        %849 = vmatmul.mubr.f32.gmra.mrb[0].mxu0 %v596
        %v850 = vpop.f32.mrb[0].mxu0
        %v851 = vadd.f32 0.0, %v850
        %v852 = vpop.f32.mrb[0].mxu0
        %v853 = vadd.f32 0.0, %v852
        %854 = vdwg.mxu0
        %v855 = vmul.f32 %v420, %v429
        %v856 = vmul.f32 %v422, %v430
        %v857 = vmul.f32 %v423, %v431
        %v858 = vmul.f32 %v424, %v432
        %v859 = vmul.f32 %v425, %v433
        %v860 = vmul.f32 %v426, %v434
        %v861 = vmul.f32 %v427, %v435
        %v862 = vmul.f32 %v428, %v436
        %v863 = vadd.f32 %v855, %v857
        %v864 = vadd.f32 %v863, %v859
        %v865 = vadd.f32 %v864, %v861
        %v866 = vrot.slane %v865, 4
        %v867 = vadd.f32 %v865, %v866
        %v868 = vrot.slane %v867, 2
        %v869 = vadd.f32 %v867, %v868
        %v870 = vrot.slane %v869, 1
        %v871 = vadd.f32 %v869, %v870
        %v872 = vadd.f32 %v856, %v858
        %v873 = vadd.f32 %v872, %v860
        %v874 = vadd.f32 %v873, %v862
        %v875 = vrot.slane %v874, 4
        %v876 = vadd.f32 %v874, %v875
        %v877 = vrot.slane %v876, 2
        %v878 = vadd.f32 %v876, %v877
        %v879 = vrot.slane %v878, 1
        %v880 = vadd.f32 %v878, %v879
        %v881 = vmax.f32 %v665, %v677
        %v882 = vmax.f32 %v671, %v683
        %v883 = vmax.f32 %v881, %v689
        %v884 = vmax.f32 %v882, %v695
        %v885 = vmax.f32 %v883, %v701
        %v886 = vmax.f32 %v884, %v707
        %v887 = vmax.f32 %v885, %v713
        %v888 = vmax.f32 %v886, %v719
        %v889 = vmax.f32 %v887, %v725
        %v890 = vmax.f32 %v888, %v731
        %v891 = vmax.f32 %v889, %v737
        %v892 = vmax.f32 %v890, %v743
        %v893 = vmax.f32 %v891, %v749
        %v894 = vmax.f32 %v892, %v755
        %v895 = vmax.f32 %v893, %v761
        %v896 = vmax.f32 %v894, %v767
        %v897 = vmax.f32 %v895, %v773
        %v898 = vmax.f32 %v896, %v779
        %v899 = vmax.f32 %v897, %v785
        %v900 = vmax.f32 %v898, %v791
        %v901 = vmax.f32 %v899, %v797
        %v902 = vmax.f32 %v900, %v803
        %v903 = vmax.f32 %v901, %v809
        %v904 = vmax.f32 %v902, %v815
        %v905 = vmax.f32 %v903, %v821
        %v906 = vmax.f32 %v904, %v827
        %v907 = vmax.f32 %v905, %v833
        %v908 = vmax.f32 %v906, %v839
        %v909 = vmax.f32 %v907, %v845
        %v910 = vmax.f32 %v908, %v851
        %v911 = vmax.f32 %v909, %v910
        %v912 = vrot.slane %v911, 4
        %v913 = vmax.f32 %v911, %v912
        %v914 = vrot.slane %v913, 2
        %v915 = vmax.f32 %v913, %v914
        %v916 = vrot.slane %v915, 1
        %v917 = vmax.f32 %v915, %v916
        %v918 = vmax.f32 %v667, %v679
        %v919 = vmax.f32 %v673, %v685
        %v920 = vmax.f32 %v918, %v691
        %v921 = vmax.f32 %v919, %v697
        %v922 = vmax.f32 %v920, %v703
        %v923 = vmax.f32 %v921, %v709
        %v924 = vmax.f32 %v922, %v715
        %v925 = vmax.f32 %v923, %v721
        %v926 = vmax.f32 %v924, %v727
        %v927 = vmax.f32 %v925, %v733
        %v928 = vmax.f32 %v926, %v739
        %v929 = vmax.f32 %v927, %v745
        %v930 = vmax.f32 %v928, %v751
        %v931 = vmax.f32 %v929, %v757
        %v932 = vmax.f32 %v930, %v763
        %v933 = vmax.f32 %v931, %v769
        %v934 = vmax.f32 %v932, %v775
        %v935 = vmax.f32 %v933, %v781
        %v936 = vmax.f32 %v934, %v787
        %v937 = vmax.f32 %v935, %v793
        %v938 = vmax.f32 %v936, %v799
        %v939 = vmax.f32 %v937, %v805
        %v940 = vmax.f32 %v938, %v811
        %v941 = vmax.f32 %v939, %v817
        %v942 = vmax.f32 %v940, %v823
        %v943 = vmax.f32 %v941, %v829
        %v944 = vmax.f32 %v942, %v835
        %v945 = vmax.f32 %v943, %v841
        %v946 = vmax.f32 %v944, %v847
        %v947 = vmax.f32 %v945, %v853
        %v948 = vmax.f32 %v946, %v947
        %v949 = vrot.slane %v948, 4
        %v950 = vmax.f32 %v948, %v949
        %v951 = vrot.slane %v950, 2
        %v952 = vmax.f32 %v950, %v951
        %v953 = vrot.slane %v952, 1
        %v954 = vmax.f32 %v952, %v953
        %v955 = vsub.f32 %v665, %v917
        %v956 = vsub.f32 %v667, %v954
        %v957 = vsub.f32 %v671, %v917
        %v958 = vsub.f32 %v673, %v954
        %v959 = vsub.f32 %v677, %v917
        %v960 = vsub.f32 %v679, %v954
        %v961 = vsub.f32 %v683, %v917
        %v962 = vsub.f32 %v685, %v954
        %v963 = vsub.f32 %v689, %v917
        %v964 = vsub.f32 %v691, %v954
        %v965 = vsub.f32 %v695, %v917
        %v966 = vsub.f32 %v697, %v954
        %v967 = vsub.f32 %v701, %v917
        %v968 = vsub.f32 %v703, %v954
        %v969 = vsub.f32 %v707, %v917
        %v970 = vsub.f32 %v709, %v954
        %v971 = vsub.f32 %v713, %v917
        %v972 = vsub.f32 %v715, %v954
        %v973 = vsub.f32 %v719, %v917
        %v974 = vsub.f32 %v721, %v954
        %v975 = vsub.f32 %v725, %v917
        %v976 = vsub.f32 %v727, %v954
        %v977 = vsub.f32 %v731, %v917
        %v978 = vsub.f32 %v733, %v954
        %v979 = vsub.f32 %v737, %v917
        %v980 = vsub.f32 %v739, %v954
        %v981 = vsub.f32 %v743, %v917
        %v982 = vsub.f32 %v745, %v954
        %v983 = vsub.f32 %v749, %v917
        %v984 = vsub.f32 %v751, %v954
        %v985 = vsub.f32 %v755, %v917
        %v986 = vsub.f32 %v757, %v954
        %v987 = vsub.f32 %v761, %v917
        %v988 = vsub.f32 %v763, %v954
        %v989 = vsub.f32 %v767, %v917
        %v990 = vsub.f32 %v769, %v954
        %v991 = vsub.f32 %v773, %v917
        %v992 = vsub.f32 %v775, %v954
        %v993 = vsub.f32 %v779, %v917
        %v994 = vsub.f32 %v781, %v954
        %v995 = vsub.f32 %v785, %v917
        %v996 = vsub.f32 %v787, %v954
        %v997 = vsub.f32 %v791, %v917
        %v998 = vsub.f32 %v793, %v954
        %v999 = vsub.f32 %v797, %v917
        %v1000 = vsub.f32 %v799, %v954
        %v1001 = vsub.f32 %v803, %v917
        %v1002 = vsub.f32 %v805, %v954
        %v1003 = vsub.f32 %v809, %v917
        %v1004 = vsub.f32 %v811, %v954
        %v1005 = vsub.f32 %v815, %v917
        %v1006 = vsub.f32 %v817, %v954
        %v1007 = vsub.f32 %v821, %v917
        %v1008 = vsub.f32 %v823, %v954
        %v1009 = vsub.f32 %v827, %v917
        %v1010 = vsub.f32 %v829, %v954
        %v1011 = vsub.f32 %v833, %v917
        %v1012 = vsub.f32 %v835, %v954
        %v1013 = vsub.f32 %v839, %v917
        %v1014 = vsub.f32 %v841, %v954
        %v1015 = vsub.f32 %v845, %v917
        %v1016 = vsub.f32 %v847, %v954
        %v1017 = vsub.f32 %v851, %v917
        %v1018 = vsub.f32 %v853, %v954
        %v1019 = vmul.f32 %v955, 1.442695
        %v1020 = vpow.pop %v1019
        %v1021 = vmul.f32 %v956, 1.442695
        %v1022 = vpow.pop %v1021
        %v1023 = vmul.f32 %v957, 1.442695
        %v1024 = vpow.pop %v1023
        %v1025 = vmul.f32 %v958, 1.442695
        %v1026 = vpow.pop %v1025
        %v1027 = vmul.f32 %v959, 1.442695
        %v1028 = vpow.pop %v1027
        %v1029 = vmul.f32 %v960, 1.442695
        %v1030 = vpow.pop %v1029
        %v1031 = vmul.f32 %v961, 1.442695
        %v1032 = vpow.pop %v1031
        %v1033 = vmul.f32 %v962, 1.442695
        %v1034 = vpow.pop %v1033
        %v1035 = vmul.f32 %v963, 1.442695
        %v1036 = vpow.pop %v1035
        %v1037 = vmul.f32 %v964, 1.442695
        %v1038 = vpow.pop %v1037
        %v1039 = vmul.f32 %v965, 1.442695
        %v1040 = vpow.pop %v1039
        %v1041 = vmul.f32 %v966, 1.442695
        %v1042 = vpow.pop %v1041
        %v1043 = vmul.f32 %v967, 1.442695
        %v1044 = vpow.pop %v1043
        %v1045 = vmul.f32 %v968, 1.442695
        %v1046 = vpow.pop %v1045
        %v1047 = vmul.f32 %v969, 1.442695
        %v1048 = vpow.pop %v1047
        %v1049 = vmul.f32 %v970, 1.442695
        %v1050 = vpow.pop %v1049
        %v1051 = vmul.f32 %v971, 1.442695
        %v1052 = vpow.pop %v1051
        %v1053 = vmul.f32 %v972, 1.442695
        %v1054 = vpow.pop %v1053
        %v1055 = vmul.f32 %v973, 1.442695
        %v1056 = vpow.pop %v1055
        %v1057 = vmul.f32 %v974, 1.442695
        %v1058 = vpow.pop %v1057
        %v1059 = vmul.f32 %v975, 1.442695
        %v1060 = vpow.pop %v1059
        %v1061 = vmul.f32 %v976, 1.442695
        %v1062 = vpow.pop %v1061
        %v1063 = vmul.f32 %v977, 1.442695
        %v1064 = vpow.pop %v1063
        %v1065 = vmul.f32 %v978, 1.442695
        %v1066 = vpow.pop %v1065
        %v1067 = vmul.f32 %v979, 1.442695
        %v1068 = vpow.pop %v1067
        %v1069 = vmul.f32 %v980, 1.442695
        %v1070 = vpow.pop %v1069
        %v1071 = vmul.f32 %v981, 1.442695
        %v1072 = vpow.pop %v1071
        %v1073 = vmul.f32 %v982, 1.442695
        %v1074 = vpow.pop %v1073
        %v1075 = vmul.f32 %v983, 1.442695
        %v1076 = vpow.pop %v1075
        %v1077 = vmul.f32 %v984, 1.442695
        %v1078 = vpow.pop %v1077
        %v1079 = vmul.f32 %v985, 1.442695
        %v1080 = vpow.pop %v1079
        %v1081 = vmul.f32 %v986, 1.442695
        %v1082 = vpow.pop %v1081
        %v1083 = vmul.f32 %v987, 1.442695
        %v1084 = vpow.pop %v1083
        %v1085 = vmul.f32 %v988, 1.442695
        %v1086 = vpow.pop %v1085
        %v1087 = vmul.f32 %v989, 1.442695
        %v1088 = vpow.pop %v1087
        %v1089 = vmul.f32 %v990, 1.442695
        %v1090 = vpow.pop %v1089
        %v1091 = vmul.f32 %v991, 1.442695
        %v1092 = vpow.pop %v1091
        %v1093 = vmul.f32 %v992, 1.442695
        %v1094 = vpow.pop %v1093
        %v1095 = vmul.f32 %v993, 1.442695
        %v1096 = vpow.pop %v1095
        %v1097 = vmul.f32 %v994, 1.442695
        %v1098 = vpow.pop %v1097
        %v1099 = vmul.f32 %v995, 1.442695
        %v1100 = vpow.pop %v1099
        %v1101 = vmul.f32 %v996, 1.442695
        %v1102 = vpow.pop %v1101
        %v1103 = vmul.f32 %v997, 1.442695
        %v1104 = vpow.pop %v1103
        %v1105 = vmul.f32 %v998, 1.442695
        %v1106 = vpow.pop %v1105
        %v1107 = vmul.f32 %v999, 1.442695
        %v1108 = vpow.pop %v1107
        %v1109 = vmul.f32 %v1000, 1.442695
        %v1110 = vpow.pop %v1109
        %v1111 = vmul.f32 %v1001, 1.442695
        %v1112 = vpow.pop %v1111
        %v1113 = vmul.f32 %v1002, 1.442695
        %v1114 = vpow.pop %v1113
        %v1115 = vmul.f32 %v1003, 1.442695
        %v1116 = vpow.pop %v1115
        %v1117 = vmul.f32 %v1004, 1.442695
        %v1118 = vpow.pop %v1117
        %v1119 = vmul.f32 %v1005, 1.442695
        %v1120 = vpow.pop %v1119
        %v1121 = vmul.f32 %v1006, 1.442695
        %v1122 = vpow.pop %v1121
        %v1123 = vmul.f32 %v1007, 1.442695
        %v1124 = vpow.pop %v1123
        %v1125 = vmul.f32 %v1008, 1.442695
        %v1126 = vpow.pop %v1125
        %v1127 = vmul.f32 %v1009, 1.442695
        %v1128 = vpow.pop %v1127
        %v1129 = vmul.f32 %v1010, 1.442695
        %v1130 = vpow.pop %v1129
        %v1131 = vmul.f32 %v1011, 1.442695
        %v1132 = vpow.pop %v1131
        %v1133 = vmul.f32 %v1012, 1.442695
        %v1134 = vpow.pop %v1133
        %v1135 = vmul.f32 %v1013, 1.442695
        %v1136 = vpow.pop %v1135
        %v1137 = vmul.f32 %v1014, 1.442695
        %v1138 = vpow.pop %v1137
        %v1139 = vmul.f32 %v1015, 1.442695
        %v1140 = vpow.pop %v1139
        %v1141 = vmul.f32 %v1016, 1.442695
        %v1142 = vpow.pop %v1141
        %v1143 = vmul.f32 %v1017, 1.442695
        %v1144 = vpow.pop %v1143
        %v1145 = vmul.f32 %v1018, 1.442695
        %v1146 = vpow.pop %v1145
        %v1147 = vadd.f32 %v1020, %v1024
        %v1148 = vadd.f32 %v1147, %v1028
        %v1149 = vadd.f32 %v1148, %v1032
        %v1150 = vadd.f32 %v1149, %v1036
        %v1151 = vadd.f32 %v1150, %v1040
        %v1152 = vadd.f32 %v1151, %v1044
        %v1153 = vadd.f32 %v1152, %v1048
        %v1154 = vadd.f32 %v1153, %v1052
        %v1155 = vadd.f32 %v1154, %v1056
        %v1156 = vadd.f32 %v1155, %v1060
        %v1157 = vadd.f32 %v1156, %v1064
        %v1158 = vadd.f32 %v1157, %v1068
        %v1159 = vadd.f32 %v1158, %v1072
        %v1160 = vadd.f32 %v1159, %v1076
        %v1161 = vadd.f32 %v1160, %v1080
        %v1162 = vadd.f32 %v1161, %v1084
        %v1163 = vadd.f32 %v1162, %v1088
        %v1164 = vadd.f32 %v1163, %v1092
        %v1165 = vadd.f32 %v1164, %v1096
        %v1166 = vadd.f32 %v1165, %v1100
        %v1167 = vadd.f32 %v1166, %v1104
        %v1168 = vadd.f32 %v1167, %v1108
        %v1169 = vadd.f32 %v1168, %v1112
        %v1170 = vadd.f32 %v1169, %v1116
        %v1171 = vadd.f32 %v1170, %v1120
        %v1172 = vadd.f32 %v1171, %v1124
        %v1173 = vadd.f32 %v1172, %v1128
        %v1174 = vadd.f32 %v1173, %v1132
        %v1175 = vadd.f32 %v1174, %v1136
        %v1176 = vadd.f32 %v1175, %v1140
        %v1177 = vadd.f32 %v1176, %v1144
        %v1178 = vrot.slane %v1177, 4
        %v1179 = vadd.f32 %v1177, %v1178
        %v1180 = vrot.slane %v1179, 2
        %v1181 = vadd.f32 %v1179, %v1180
        %v1182 = vrot.slane %v1181, 1
        %v1183 = vadd.f32 %v1181, %v1182
        %v1184 = vadd.f32 %v1022, %v1026
        %v1185 = vadd.f32 %v1184, %v1030
        %v1186 = vadd.f32 %v1185, %v1034
        %v1187 = vadd.f32 %v1186, %v1038
        %v1188 = vadd.f32 %v1187, %v1042
        %v1189 = vadd.f32 %v1188, %v1046
        %v1190 = vadd.f32 %v1189, %v1050
        %v1191 = vadd.f32 %v1190, %v1054
        %v1192 = vadd.f32 %v1191, %v1058
        %v1193 = vadd.f32 %v1192, %v1062
        %v1194 = vadd.f32 %v1193, %v1066
        %v1195 = vadd.f32 %v1194, %v1070
        %v1196 = vadd.f32 %v1195, %v1074
        %v1197 = vadd.f32 %v1196, %v1078
        %v1198 = vadd.f32 %v1197, %v1082
        %v1199 = vadd.f32 %v1198, %v1086
        %v1200 = vadd.f32 %v1199, %v1090
        %v1201 = vadd.f32 %v1200, %v1094
        %v1202 = vadd.f32 %v1201, %v1098
        %v1203 = vadd.f32 %v1202, %v1102
        %v1204 = vadd.f32 %v1203, %v1106
        %v1205 = vadd.f32 %v1204, %v1110
        %v1206 = vadd.f32 %v1205, %v1114
        %v1207 = vadd.f32 %v1206, %v1118
        %v1208 = vadd.f32 %v1207, %v1122
        %v1209 = vadd.f32 %v1208, %v1126
        %v1210 = vadd.f32 %v1209, %v1130
        %v1211 = vadd.f32 %v1210, %v1134
        %v1212 = vadd.f32 %v1211, %v1138
        %v1213 = vadd.f32 %v1212, %v1142
        %v1214 = vadd.f32 %v1213, %v1146
        %v1215 = vrot.slane %v1214, 4
        %v1216 = vadd.f32 %v1214, %v1215
        %v1217 = vrot.slane %v1216, 2
        %v1218 = vadd.f32 %v1216, %v1217
        %v1219 = vrot.slane %v1218, 1
        %v1220 = vadd.f32 %v1218, %v1219
        %v1221 = vlog2.pop %v1183
        %v1222 = vmul.f32 %v1221, 0.6931472
        %v1223 = vlog2.pop %v1220
        %v1224 = vmul.f32 %v1223, 0.6931472
        %v1225 = vadd.f32 %v917, %v1222
        %v1226 = vadd.f32 %v954, %v1224
        %v1227 = vsub.f32 %v1225, %v871
        %v1228 = vsub.f32 %v1226, %v880
        %v1231 = vcombine.low %v1227, %v1228
        %v1233 = vunpack.c.l.s4 1966171168
        %v1234 = vunpack.c.0.s8 %v1233
        %v1235 = vlaneseq
        %v1236 = vshrl.u32 %v1235, 7
        %v1237 = vsub.s32 %v1234, %v1236
        %v1238 = vrot.slane %v1231, %v1237
        %v1240 = vunpack.c.l.s4 1966171168
        %v1241 = vunpack.c.0.s8 %v1240
        %v1242 = vlaneseq
        %v1243 = vshrl.u32 %v1242, 7
        %v1244 = vsub.s32 %v1241, %v1243
        %v1245 = vrot.slane %v1238, %v1244
        %v1247 = vlaneseq
        %vm1248 = vcmp.ge.s32.totalorder %v1247, 0
        %vm1249 = vcmp.lt.s32.totalorder %v1247, 256
        %vm1250 = vmand %vm1248, %vm1249
        %1251 = vst.msk [vmem:[%s287] sm:$0x3] %vm1250, %v1245
        %s1252 = sand.u32 %s127, 1
        %s1253 = scalar_lea.sflag [#allocation4], %s1252
        %s1254 = sand.u32 %s127, 1
        %s1255 = smul.addr %s1254, 2
        %s1256 = scalar_lea.vmem [#allocation8], %s1255
        // Predicated region
        $region45: #{tpu_custom_call.1} parent=31 // pred_check
          %p1257 = pneg %p137
        $region46: #{tpu_custom_call.1} parent=31 // pred_check_branch
          %1259 = sbr.rel (%p1257) target = $region48
        $region47: #{tpu_custom_call.1} parent=31 // pred_region
          %s1260 = smul.u32 2, %s28
          %s1262 = ssub.s32 32, 32
          %1263 = vsyncadd %s1253, %s1262
          %s1264 = smul.addr %s27, 2
          %s1265 = sadd.s32 %s1260, %s1264
          %s1266 = smul.addr %s1265, 16
          %s1267 = scalar_lea.hbm %s3, %s1266
          %s1269 = sshll.u32 %s1256, 4
          %s1270 = int_to_ptr.vmem [resolvable:$true] %s1269
          %1272 = dma.vmem_to_hbm [thread:$0]  %s1270, 32, %s1267, %s1253
        $region48: #{tpu_custom_call.1} parent=31 // pred_fallthru
          _
      $region32: #{tpu_custom_call.1} parent=5 // pred_fallthru
        _
      %p1273 = scmp.le.s32.totalorder 2, %s18
      // Predicated region
      $region49: #{tpu_custom_call.1} parent=5 // pred_check
        %p1274 = pneg %p1273
      $region50: #{tpu_custom_call.1} parent=5 // pred_check_branch
        %1276 = sbr.rel (%p1274) target = $region52
      $region51: #{tpu_custom_call.1} parent=5 // pred_region
        %s1277 = ssub.s32 %s18, 2
        // Predicated region
        $region53: #{tpu_custom_call.1} parent=51 // pred_check
          %p1278 = pneg %p143
        $region54: #{tpu_custom_call.1} parent=51 // pred_check_branch
          %1280 = sbr.rel (%p1278) target = $region56
        $region55: #{tpu_custom_call.1} parent=51 // pred_region
          %s1281 = sand.u32 %s128, 1
          %s1282 = scalar_lea.sflag [#allocation4], %s1281
          %s1283 = sand.u32 %s128, 1
          %s1284 = smul.addr %s1283, 2
          %s1285 = scalar_lea.vmem [#allocation8], %s1284
          %1286 = dma.done %s1282, 32
        $region56: #{tpu_custom_call.1} parent=51 // pred_fallthru
          _
      $region52: #{tpu_custom_call.1} parent=5 // pred_fallthru
        _
    $region6: #{tpu_custom_call.1} parent=1 // loop_footer
      %s22 = sadd.s32 1, %s18
    $region7: #{tpu_custom_call.1} parent=1 // loop_footer_branch
      %17 = sbr.rel target = $region3
    $region8: #{tpu_custom_call.1} parent=1 // loop_exit
      _
    %1287 = vsyncpa [#allocation3], 1
    %s1288 = scalar_lea.sflag [#allocation3], 1
    %1289 = vsyncpa %s1288, 1
    %1290 = vsyncpa [#allocation6], 1
    %s1291 = scalar_lea.sflag [#allocation6], 1
    %1292 = vsyncpa %s1291, 1
    %1293 = vsyncpa [#allocation4], 1
    %s1294 = scalar_lea.sflag [#allocation4], 1
    %1295 = vsyncpa %s1294, 1

</llo_original>
